<compile_context>
chip_gen: v6e
topology: v6e:2x2x1
jax: 0.10.0
libtpu: 0.0.40
codegen_flags: <defaults>
</compile_context>

<pallas_src>
import functools

import jax
import jax.numpy as jnp
import numpy as np
from jax.experimental import pallas as pl
from jax.experimental.pallas import tpu as pltpu

NEG_SLOPE = 0.2  # LeakyReLU(0.2) from convBNReLU


def _leaky(v):
    # leaky_relu(x) = max(x, 0.2 * x) for slope in (0, 1)
    return jnp.maximum(v, NEG_SLOPE * v)


# ------------------------------ fused kernel ------------------------------- #
def _disc_kernel(x_ref, ext_ref, sums_ref,
                 w1_ref, b1_ref, w2_ref, b2_ref, w3_ref, b3_ref, w4_ref, b4_ref,
                 wc_ref, wd_ref, bc_ref,
                 o_ref):
    """Whole DiscriminatorConditional forward for the batch, everything VMEM resident.

    x:(Np,Cin) the single data-dependent spatial row per sample (L0 = 1).
    w1..w4:(Cin_k,Cout_k), b*:(1,Cout) -- k=1 conv weights as GEMM operands.
    wc:(512,1)  = W5[center tap] @ source_w[:64]        (block5 ∘ source, data part)
    wd:(1,1)    = source_w[64]                          (diff feature weight)
    bc:(1,1)    = all padding-row + bias contributions through block5 and source.
    ext/sums:(Np,1).  o:(Np,1) sigmoid output.
    """
    f32 = jnp.float32

    # block1..block4 (k=1 convs + LeakyReLU), batched over N: one dot per layer.
    a1 = _leaky(jnp.dot(x_ref[...], w1_ref[...], preferred_element_type=f32) + b1_ref[...])
    a2 = _leaky(jnp.dot(a1, w2_ref[...], preferred_element_type=f32) + b2_ref[...])
    a3 = _leaky(jnp.dot(a2, w3_ref[...], preferred_element_type=f32) + b3_ref[...])
    a4 = _leaky(jnp.dot(a3, w4_ref[...], preferred_element_type=f32) + b4_ref[...])   # (Np, 512)

    # diff = |extreme - extremeness_measure(inp)| / |extreme|   (whole batch at once)
    diff = jnp.abs(ext_ref[...] - sums_ref[...]) / jnp.abs(ext_ref[...])               # (Np, 1)

    # block5 ∘ flatten ∘ source, with all padding/bias contributions pre-folded into bc.
    logit = (jnp.dot(a4, wc_ref[...], preferred_element_type=f32)
             + diff * wd_ref[...] + bc_ref[...])                                        # (Np, 1)

    # sigmoid via EUP exp + approx reciprocal; single batched store.
    o_ref[...] = pl.reciprocal(1.0 + jnp.exp(-logit), approx=True)


# ----------------------- parameters (deterministic) ------------------------ #
def init_params(key, in_channels):
    """Deterministic parameters with PyTorch layouts (Conv1d: (Cout, Cin, K))."""
    def conv(k, cout, cin, ksz):
        kw, kb = jax.random.split(k)
        bound = 1.0 / float(cin * ksz) ** 0.5
        w = jax.random.uniform(kw, (cout, cin, ksz), jnp.float32, -bound, bound)
        b = jax.random.uniform(kb, (cout,), jnp.float32, -bound, bound)
        return w, b

    ks = jax.random.split(key, 6)
    params = {
        "block1": conv(ks[0], 64, in_channels, 1),
        "block2": conv(ks[1], 128, 64, 1),
        "block3": conv(ks[2], 256, 128, 1),
        "block4": conv(ks[3], 512, 256, 1),
        "block5": conv(ks[4], 64, 512, 6),
    }
    kw, kb = jax.random.split(ks[5])
    bound = 1.0 / 65.0 ** 0.5
    params["source_w"] = jax.random.uniform(kw, (1, 65), jnp.float32, -bound, bound)
    params["source_b"] = jax.random.uniform(kb, (1,), jnp.float32, -bound, bound)
    return params


def prepare_params(params):
    """One-time weight prep (hoisted out of the forward path).

    Besides GEMM layouts, this precomputes every activation row that originates from the
    p=1 zero padding (they only depend on weights/biases for k=1 convs) and folds their
    contribution -- together with block5's constant taps, its bias and the source bias --
    into a single scalar `bc`.  The kernel then only computes the single data-dependent
    row per sample and one fused block5∘source dot.
    """
    def k1_mat(name):
        w, b = params[name]                       # (Cout, Cin, 1), (Cout,)
        return w[:, :, 0].T, b.reshape(1, -1)     # (Cin, Cout), (1, Cout)

    w1, b1 = k1_mat("block1")
    w2, b2 = k1_mat("block2")
    w3, b3 = k1_mat("block3")
    w4, b4 = k1_mat("block4")

    w5_raw, b5_raw = params["block5"]             # (64, 512, 6), (64,)
    w5 = jnp.transpose(w5_raw, (2, 1, 0))         # (K, Cin, Cout) = (6, 512, 64)
    ws64 = params["source_w"][0, :64].reshape(64, 1)    # source weight on block5 channels
    wd = params["source_w"][0, 64].reshape(1, 1)        # source weight on the diff feature
    bs = params["source_b"].reshape(1, 1)

    # Constant (padding-derived) activation rows for L0 = 1:
    #   a1 = [c1, d1, c1]                       a2 = [e2, c2, d2, c2, e2]
    #   a3 = [e3, f3, c3, d3, c3, f3, e3]       a4 = [e4, g4, f4, c4, d4, c4, f4, g4, e4]
    # (only d* depends on the input).  block5 window = a4 rows 0..5.
    c1 = _leaky(b1)
    e2 = _leaky(b2)
    c2 = _leaky(c1 @ w2 + b2)
    e3 = _leaky(b3)
    f3 = _leaky(e2 @ w3 + b3)
    c3 = _leaky(c2 @ w3 + b3)
    e4 = _leaky(b4)
    g4 = _leaky(e3 @ w4 + b4)
    f4 = _leaky(f3 @ w4 + b4)
    c4 = _leaky(c3 @ w4 + b4)

    wc = w5[4] @ ws64                                               # (512, 1) data-tap ∘ source
    const5 = (e4 @ w5[0] + g4 @ w5[1] + f4 @ w5[2]
              + c4 @ (w5[3] + w5[5]) + b5_raw.reshape(1, 64))       # (1, 64) constant taps + bias
    bc = const5 @ ws64 + bs                                         # (1, 1)

    return dict(w1=w1, b1=b1, w2=w2, b2=b2, w3=w3, b3=b3, w4=w4, b4=b4,
                wc=wc, wd=wd, bc=bc)


# ------------------------------ forward pass ------------------------------- #
def discriminator_forward(prepped, inp, extreme, *, extremeness_measure):
    """inp: (N, Cin, L) NCL; extreme: (N, 1).  Returns sigmoid probs (N, 1)."""
    # extremeness_measure is an arbitrary user-supplied callable (constructor arg of the
    # PyTorch module); it is evaluated with plain jnp here and its per-sample scalar
    # result feeds the fused kernel.
    n, _, l0 = inp.shape
    assert l0 == 1, ("source = Linear(65, 1) + view(N, -1) pins block5 to one output "
                     "position, i.e. input spatial length 1")

    sums = extremeness_measure(inp).reshape(-1, 1).astype(jnp.float32)
    ext = extreme.reshape(-1, 1).astype(jnp.float32)
    x = inp[:, :, 0].astype(jnp.float32)                     # (N, Cin) -- the one data row

    # Pad the batch to a multiple of 8 (sublane granularity) so every GEMM runs with
    # unmasked rows; padded rows are sliced off below (ext padded with 1 to stay finite).
    n_pad = -(-n // 8) * 8
    if n_pad != n:
        x = jnp.pad(x, ((0, n_pad - n), (0, 0)))
        ext = jnp.pad(ext, ((0, n_pad - n), (0, 0)), constant_values=1.0)
        sums = jnp.pad(sums, ((0, n_pad - n), (0, 0)))

    out = pl.pallas_call(
        _disc_kernel,
        out_shape=jax.ShapeDtypeStruct((n_pad, 1), jnp.float32),
    )(x, ext, sums,
      prepped["w1"], prepped["b1"], prepped["w2"], prepped["b2"],
      prepped["w3"], prepped["b3"], prepped["w4"], prepped["b4"],
      prepped["wc"], prepped["wd"], prepped["bc"])
    return out[:n]


# --------------------------- pure-JAX reference ----------------------------- #
def discriminator_forward_ref(params, extremeness_measure, inp, extreme):
    n = inp.shape[0]
    sums = extremeness_measure(inp).reshape(-1, 1)
    ext = extreme.reshape(-1, 1)
    diff = jnp.abs(ext - sums) / jnp.abs(ext)

    x = jnp.transpose(inp, (0, 2, 1))                                 # NLC
    for name in ("block1", "block2", "block3", "block4"):
        w, b = params[name]                                           # (Cout, Cin, 1), (Cout,)
        xp = jnp.pad(x, ((0, 0), (1, 1), (0, 0)))
        y = jnp.einsum("nlc,oc->nlo", xp, w[:, :, 0], precision="highest") + b
        x = jnp.maximum(y, NEG_SLOPE * y)

    w5, b5 = params["block5"]                                         # (64, 512, 6), (64,)
    l4 = x.shape[1]
    m5 = (l4 - 6) // 4 + 1
    cols = []
    for m in range(m5):
        win = x[:, 4 * m:4 * m + 6, :]                                # (N, 6, 512)
        cols.append(jnp.einsum("nrc,ocr->no", win, w5, precision="highest") + b5)
    out5 = jnp.stack(cols, axis=-1)                                   # (N, 64, m5) - torch NCL
    flat = out5.reshape(n, -1)                                        # torch .view(size, -1)
    feat = jnp.concatenate([flat, diff], axis=1)                      # (N, 64*m5 + 1)
    logit = feat @ params["source_w"].T + params["source_b"]
    return jax.nn.sigmoid(logit)


# ---------------------------------- main ------------------------------------ #
if __name__ == "__main__":
    key = jax.random.PRNGKey(0)
    kp, ki, ke = jax.random.split(key, 3)

    in_channels, batch = 4, 2
    seq_len = 1   # pinned by Linear(65, 1) + view(N, -1); see header comment

    params = init_params(kp, in_channels)
    prepped = prepare_params(params)        # one-time weight prep (hoisted out of forward)

    inp = jax.random.normal(ki, (batch, in_channels, seq_len), jnp.float32)
    extreme = jax.random.uniform(ke, (batch, 1), jnp.float32, 0.5, 1.5)

    def extremeness_measure(x):             # example measure (e.g. total of the series)
        return jnp.sum(x, axis=(1, 2))

    fwd = jax.jit(functools.partial(discriminator_forward,
                                    extremeness_measure=extremeness_measure))
    out = jax.block_until_ready(fwd(prepped, inp, extreme))

    assert out.shape == (batch, 1), out.shape
    assert out.dtype == jnp.float32

    ref = discriminator_forward_ref(params, extremeness_measure, inp, extreme)
    assert np.allclose(np.asarray(out), np.asarray(ref), rtol=1e-2, atol=1e-2), (out, ref)

    print("KERNEL_OK")
</pallas_src>

<mosaic_0001>
module attributes {stable_mosaic.version = 11 : i64} {
  func.func @_disc_kernel(%arg0: memref<8x4xf32, #tpu.memory_space<vmem>>, %arg1: memref<8x1xf32, #tpu.memory_space<vmem>>, %arg2: memref<8x1xf32, #tpu.memory_space<vmem>>, %arg3: memref<4x64xf32, #tpu.memory_space<vmem>>, %arg4: memref<1x64xf32, #tpu.memory_space<vmem>>, %arg5: memref<64x128xf32, #tpu.memory_space<vmem>>, %arg6: memref<1x128xf32, #tpu.memory_space<vmem>>, %arg7: memref<128x256xf32, #tpu.memory_space<vmem>>, %arg8: memref<1x256xf32, #tpu.memory_space<vmem>>, %arg9: memref<256x512xf32, #tpu.memory_space<vmem>>, %arg10: memref<1x512xf32, #tpu.memory_space<vmem>>, %arg11: memref<512x1xf32, #tpu.memory_space<vmem>>, %arg12: memref<1x1xf32, #tpu.memory_space<vmem>>, %arg13: memref<1x1xf32, #tpu.memory_space<vmem>>, %arg14: memref<8x1xf32, #tpu.memory_space<vmem>>) attributes {dimension_semantics = [], scalar_prefetch = 0 : i64, scratch_operands = 0 : i64, tpu.core_type = #tpu.core_type<tc>} {
    %c0 = arith.constant 0 : index
    %c0_0 = arith.constant 0 : index
    %0 = vector.load %arg0[%c0, %c0_0] : memref<8x4xf32, #tpu.memory_space<vmem>>, vector<8x4xf32>
    %c0_1 = arith.constant 0 : index
    %c0_2 = arith.constant 0 : index
    %1 = vector.load %arg3[%c0_1, %c0_2] : memref<4x64xf32, #tpu.memory_space<vmem>>, vector<4x64xf32>
    %cst = arith.constant dense<0.000000e+00> : vector<8x64xf32>
    %2 = tpu.matmul %0, %1, %cst {dimension_numbers = #tpu.dot_dimension_numbers<[1], [0], [0], [1], [0, 0, 1, 1], [], []>} : vector<8x4xf32>, vector<4x64xf32>, vector<8x64xf32> -> vector<8x64xf32>
    %c0_3 = arith.constant 0 : index
    %c0_4 = arith.constant 0 : index
    %3 = vector.load %arg4[%c0_3, %c0_4] : memref<1x64xf32, #tpu.memory_space<vmem>>, vector<1x64xf32>
    %4 = vector.broadcast %3 : vector<1x64xf32> to vector<8x64xf32>
    %5 = arith.addf %2, %4 : vector<8x64xf32>
    %cst_5 = arith.constant 2.000000e-01 : f32
    %6 = vector.broadcast %cst_5 : f32 to vector<8x64xf32>
    %7 = arith.mulf %6, %5 : vector<8x64xf32>
    %8 = arith.maximumf %5, %7 : vector<8x64xf32>
    %c0_6 = arith.constant 0 : index
    %c0_7 = arith.constant 0 : index
    %9 = vector.load %arg5[%c0_6, %c0_7] : memref<64x128xf32, #tpu.memory_space<vmem>>, vector<64x128xf32>
    %cst_8 = arith.constant dense<0.000000e+00> : vector<8x128xf32>
    %10 = tpu.matmul %8, %9, %cst_8 {dimension_numbers = #tpu.dot_dimension_numbers<[1], [0], [0], [1], [0, 0, 1, 1], [], []>} : vector<8x64xf32>, vector<64x128xf32>, vector<8x128xf32> -> vector<8x128xf32>
    %c0_9 = arith.constant 0 : index
    %c0_10 = arith.constant 0 : index
    %11 = vector.load %arg6[%c0_9, %c0_10] : memref<1x128xf32, #tpu.memory_space<vmem>>, vector<1x128xf32>
    %12 = vector.broadcast %11 : vector<1x128xf32> to vector<8x128xf32>
    %13 = arith.addf %10, %12 : vector<8x128xf32>
    %cst_11 = arith.constant 2.000000e-01 : f32
    %14 = vector.broadcast %cst_11 : f32 to vector<8x128xf32>
    %15 = arith.mulf %14, %13 : vector<8x128xf32>
    %16 = arith.maximumf %13, %15 : vector<8x128xf32>
    %c0_12 = arith.constant 0 : index
    %c0_13 = arith.constant 0 : index
    %17 = vector.load %arg7[%c0_12, %c0_13] : memref<128x256xf32, #tpu.memory_space<vmem>>, vector<128x256xf32>
    %cst_14 = arith.constant dense<0.000000e+00> : vector<8x256xf32>
    %18 = tpu.matmul %16, %17, %cst_14 {dimension_numbers = #tpu.dot_dimension_numbers<[1], [0], [0], [1], [0, 0, 1, 1], [], []>} : vector<8x128xf32>, vector<128x256xf32>, vector<8x256xf32> -> vector<8x256xf32>
    %c0_15 = arith.constant 0 : index
    %c0_16 = arith.constant 0 : index
    %19 = vector.load %arg8[%c0_15, %c0_16] : memref<1x256xf32, #tpu.memory_space<vmem>>, vector<1x256xf32>
    %20 = vector.broadcast %19 : vector<1x256xf32> to vector<8x256xf32>
    %21 = arith.addf %18, %20 : vector<8x256xf32>
    %cst_17 = arith.constant 2.000000e-01 : f32
    %22 = vector.broadcast %cst_17 : f32 to vector<8x256xf32>
    %23 = arith.mulf %22, %21 : vector<8x256xf32>
    %24 = arith.maximumf %21, %23 : vector<8x256xf32>
    %c0_18 = arith.constant 0 : index
    %c0_19 = arith.constant 0 : index
    %25 = vector.load %arg9[%c0_18, %c0_19] : memref<256x512xf32, #tpu.memory_space<vmem>>, vector<256x512xf32>
    %cst_20 = arith.constant dense<0.000000e+00> : vector<8x512xf32>
    %26 = tpu.matmul %24, %25, %cst_20 {dimension_numbers = #tpu.dot_dimension_numbers<[1], [0], [0], [1], [0, 0, 1, 1], [], []>} : vector<8x256xf32>, vector<256x512xf32>, vector<8x512xf32> -> vector<8x512xf32>
    %c0_21 = arith.constant 0 : index
    %c0_22 = arith.constant 0 : index
    %27 = vector.load %arg10[%c0_21, %c0_22] : memref<1x512xf32, #tpu.memory_space<vmem>>, vector<1x512xf32>
    %28 = vector.broadcast %27 : vector<1x512xf32> to vector<8x512xf32>
    %29 = arith.addf %26, %28 : vector<8x512xf32>
    %cst_23 = arith.constant 2.000000e-01 : f32
    %30 = vector.broadcast %cst_23 : f32 to vector<8x512xf32>
    %31 = arith.mulf %30, %29 : vector<8x512xf32>
    %32 = arith.maximumf %29, %31 : vector<8x512xf32>
    %c0_24 = arith.constant 0 : index
    %c0_25 = arith.constant 0 : index
    %33 = vector.load %arg1[%c0_24, %c0_25] : memref<8x1xf32, #tpu.memory_space<vmem>>, vector<8x1xf32>
    %c0_26 = arith.constant 0 : index
    %c0_27 = arith.constant 0 : index
    %34 = vector.load %arg2[%c0_26, %c0_27] : memref<8x1xf32, #tpu.memory_space<vmem>>, vector<8x1xf32>
    %35 = arith.subf %33, %34 : vector<8x1xf32>
    %36 = math.absf %35 : vector<8x1xf32>
    %c0_28 = arith.constant 0 : index
    %c0_29 = arith.constant 0 : index
    %37 = vector.load %arg1[%c0_28, %c0_29] : memref<8x1xf32, #tpu.memory_space<vmem>>, vector<8x1xf32>
    %38 = math.absf %37 : vector<8x1xf32>
    %39 = arith.divf %36, %38 : vector<8x1xf32>
    %c0_30 = arith.constant 0 : index
    %c0_31 = arith.constant 0 : index
    %40 = vector.load %arg11[%c0_30, %c0_31] : memref<512x1xf32, #tpu.memory_space<vmem>>, vector<512x1xf32>
    %cst_32 = arith.constant dense<0.000000e+00> : vector<8x1xf32>
    %41 = tpu.matmul %32, %40, %cst_32 {dimension_numbers = #tpu.dot_dimension_numbers<[1], [0], [0], [1], [0, 0, 1, 1], [], []>} : vector<8x512xf32>, vector<512x1xf32>, vector<8x1xf32> -> vector<8x1xf32>
    %c0_33 = arith.constant 0 : index
    %c0_34 = arith.constant 0 : index
    %42 = vector.load %arg12[%c0_33, %c0_34] : memref<1x1xf32, #tpu.memory_space<vmem>>, vector<1x1xf32>
    %43 = vector.broadcast %42 : vector<1x1xf32> to vector<8x1xf32>
    %44 = arith.mulf %39, %43 : vector<8x1xf32>
    %45 = arith.addf %41, %44 : vector<8x1xf32>
    %c0_35 = arith.constant 0 : index
    %c0_36 = arith.constant 0 : index
    %46 = vector.load %arg13[%c0_35, %c0_36] : memref<1x1xf32, #tpu.memory_space<vmem>>, vector<1x1xf32>
    %47 = vector.broadcast %46 : vector<1x1xf32> to vector<8x1xf32>
    %48 = arith.addf %45, %47 : vector<8x1xf32>
    %cst_37 = arith.constant 0.000000e+00 : f32
    %49 = vector.broadcast %cst_37 : f32 to vector<8x1xf32>
    %50 = arith.subf %49, %48 : vector<8x1xf32>
    %51 = math.exp %50 : vector<8x1xf32>
    %cst_38 = arith.constant 1.000000e+00 : f32
    %52 = vector.broadcast %cst_38 : f32 to vector<8x1xf32>
    %53 = arith.addf %52, %51 : vector<8x1xf32>
    %54 = tpu.reciprocal %53 {approx = true} : vector<8x1xf32> -> vector<8x1xf32>
    %c0_39 = arith.constant 0 : index
    %c0_40 = arith.constant 0 : index
    %55 = vector.load %arg14[%c0_39, %c0_40] : memref<8x1xf32, #tpu.memory_space<vmem>>, vector<8x1xf32>
    tpu.vector_store %arg14[%c0_39, %c0_40], %54 {strides = array<i32>} : memref<8x1xf32, #tpu.memory_space<vmem>>, vector<8x1xf32>,
    return
  }
}

</mosaic_0001>

<llo_original>
// kernel: discriminator_forward.1
$region0: #{discriminator_forward.1}
  #allocation0 [shape = 'u32[]', space=smem, size = 0x4, offset = 0x4, fixed_abs, tag = 'smem constant byte address 0x4 - core index']
  #allocation1 [shape = 'u32[144,128]{1,0:T(1,128)}', space=vmem, size = 0x12000, scoped, tag = 'internal scratch']
  #allocation2 [shape = 'f32[1,1]{1,0:T(1,128)S(1)}', space=vmem, size = 0x200, scoped, tag = 'scoped memory for discriminator_forward.1']
  #allocation3 [shape = 'f32[1,1]{1,0:T(1,128)S(1)}', space=vmem, size = 0x200, scoped, tag = 'scoped memory for discriminator_forward.1']
  %s0 = inlined_call_operand.vmem [shape: f32[8,4], index: 0, kind: input, shape index: {}]
  %s1 = inlined_call_operand.vmem [shape: f32[8,1], index: 1, kind: input, shape index: {}]
  %s2 = inlined_call_operand.vmem [shape: f32[8,1], index: 2, kind: input, shape index: {}]
  %s3 = inlined_call_operand.vmem [shape: f32[4,64], index: 3, kind: input, shape index: {}]
  %s4 = inlined_call_operand.vmem [shape: f32[1,64], index: 4, kind: input, shape index: {}]
  %s5 = inlined_call_operand.vmem [shape: f32[64,128], index: 5, kind: input, shape index: {}]
  %s6 = inlined_call_operand.vmem [shape: f32[1,128], index: 6, kind: input, shape index: {}]
  %s7 = inlined_call_operand.vmem [shape: f32[128,256], index: 7, kind: input, shape index: {}]
  %s8 = inlined_call_operand.vmem [shape: f32[1,256], index: 8, kind: input, shape index: {}]
  %s9 = inlined_call_operand.hbm [shape: f32[256,512], index: 9, kind: input, shape index: {}]
  %s10 = inlined_call_operand.vmem [shape: f32[1,512], index: 10, kind: input, shape index: {}]
  %s11 = inlined_call_operand.vmem [shape: f32[512,1], index: 11, kind: input, shape index: {}]
  %s12 = inlined_call_operand.<no memory space> [shape: f32[1,1], index: 12, kind: input, shape index: {}]
  %s13 = inlined_call_operand.<no memory space> [shape: f32[1,1], index: 13, kind: input, shape index: {}]
  %s14 = inlined_call_operand.vmem [shape: f32[8,1], index: 14, kind: output, shape index: {}]
  %s15 = sld [smem:[#allocation0]]
  $region70: #{discriminator_forward.1} parent=0
    _
  %s17 = ssub.s32 1, %s15
  %s18 = scalar_select 0, %s17, %s15
  %v19 = vstv %s12
  %20 = vst [vmem:[#allocation2] sm:$0x1] %v19
  %v21 = vstv %s13
  %22 = vst [vmem:[#allocation3] sm:$0x1] %v21
  $region1: #{discriminator_forward.1} parent=0
    #allocation4 [shape = 'u8[524288]{0}', space=vmem, size = 0x80000, scoped, tag = 'input window, operand 9, single buffered']
    #allocation5 [shape = 's32[1]{0}', space=sflag, size = 0x4, scoped, tag = 'scoped memory for discriminator_forward.1']
    %23 = vsyncpa [#allocation5], 0
    // Predicated region
    $region2: #{discriminator_forward.1} parent=1 // pred_check
      _
    $region3: #{discriminator_forward.1} parent=1 // pred_check_branch
      %25 = sbr.rel (0) target = $region5
    $region4: #{discriminator_forward.1} parent=1 // pred_region
      _
    $region5: #{discriminator_forward.1} parent=1 // pred_fallthru
      _
    // Predicated region
    $region6: #{discriminator_forward.1} parent=1 // pred_check
      _
    $region7: #{discriminator_forward.1} parent=1 // pred_check_branch
      %27 = sbr.rel (0) target = $region9
    $region8: #{discriminator_forward.1} parent=1 // pred_region
      _
    $region9: #{discriminator_forward.1} parent=1 // pred_fallthru
      _
    // Predicated region
    $region10: #{discriminator_forward.1} parent=1 // pred_check
      _
    $region11: #{discriminator_forward.1} parent=1 // pred_check_branch
      %29 = sbr.rel (0) target = $region13
    $region12: #{discriminator_forward.1} parent=1 // pred_region
      _
    $region13: #{discriminator_forward.1} parent=1 // pred_fallthru
      _
    // Predicated region
    $region14: #{discriminator_forward.1} parent=1 // pred_check
      _
    $region15: #{discriminator_forward.1} parent=1 // pred_check_branch
      %31 = sbr.rel (0) target = $region17
    $region16: #{discriminator_forward.1} parent=1 // pred_region
      _
    $region17: #{discriminator_forward.1} parent=1 // pred_fallthru
      _
    // Predicated region
    $region18: #{discriminator_forward.1} parent=1 // pred_check
      _
    $region19: #{discriminator_forward.1} parent=1 // pred_check_branch
      %33 = sbr.rel (0) target = $region21
    $region20: #{discriminator_forward.1} parent=1 // pred_region
      _
    $region21: #{discriminator_forward.1} parent=1 // pred_fallthru
      _
    // Predicated region
    $region22: #{discriminator_forward.1} parent=1 // pred_check
      _
    $region23: #{discriminator_forward.1} parent=1 // pred_check_branch
      %35 = sbr.rel (0) target = $region25
    $region24: #{discriminator_forward.1} parent=1 // pred_region
      _
    $region25: #{discriminator_forward.1} parent=1 // pred_fallthru
      _
    // Predicated region
    $region26: #{discriminator_forward.1} parent=1 // pred_check
      _
    $region27: #{discriminator_forward.1} parent=1 // pred_check_branch
      %37 = sbr.rel (0) target = $region29
    $region28: #{discriminator_forward.1} parent=1 // pred_region
      _
    $region29: #{discriminator_forward.1} parent=1 // pred_fallthru
      _
    // Predicated region
    $region30: #{discriminator_forward.1} parent=1 // pred_check
      _
    $region31: #{discriminator_forward.1} parent=1 // pred_check_branch
      %39 = sbr.rel (0) target = $region33
    $region32: #{discriminator_forward.1} parent=1 // pred_region
      _
    $region33: #{discriminator_forward.1} parent=1 // pred_fallthru
      _
    // Predicated region
    $region34: #{discriminator_forward.1} parent=1 // pred_check
      _
    $region35: #{discriminator_forward.1} parent=1 // pred_check_branch
      %41 = sbr.rel (0) target = $region37
    $region36: #{discriminator_forward.1} parent=1 // pred_region
      _
    $region37: #{discriminator_forward.1} parent=1 // pred_fallthru
      _
    // Predicated region
    $region38: #{discriminator_forward.1} parent=1 // pred_check
      _
    $region39: #{discriminator_forward.1} parent=1 // pred_check_branch
      %43 = sbr.rel (0) target = $region41
    $region40: #{discriminator_forward.1} parent=1 // pred_region
      %s45 = ssub.s32 16384, 16384
      %46 = vsyncadd [#allocation5], %s45
      %s47 = sshll.u32 [#allocation4], 4
      %s48 = int_to_ptr.vmem [resolvable:$true] %s47
      %53 = dma.hbm_to_vmem [thread:$0]  %s9, 16384, %s48, [#allocation5], 512, 512, 32
    $region41: #{discriminator_forward.1} parent=1 // pred_fallthru
      _
    // Predicated region
    $region42: #{discriminator_forward.1} parent=1 // pred_check
      _
    $region43: #{discriminator_forward.1} parent=1 // pred_check_branch
      %55 = sbr.rel (0) target = $region45
    $region44: #{discriminator_forward.1} parent=1 // pred_region
      _
    $region45: #{discriminator_forward.1} parent=1 // pred_fallthru
      _
    // Predicated region
    $region46: #{discriminator_forward.1} parent=1 // pred_check
      _
    $region47: #{discriminator_forward.1} parent=1 // pred_check_branch
      %57 = sbr.rel (0) target = $region49
    $region48: #{discriminator_forward.1} parent=1 // pred_region
      _
    $region49: #{discriminator_forward.1} parent=1 // pred_fallthru
      _
    // Predicated region
    $region50: #{discriminator_forward.1} parent=1 // pred_check
      _
    $region51: #{discriminator_forward.1} parent=1 // pred_check_branch
      %59 = sbr.rel (0) target = $region53
    $region52: #{discriminator_forward.1} parent=1 // pred_region
      _
    $region53: #{discriminator_forward.1} parent=1 // pred_fallthru
      _
    // Predicated region
    $region54: #{discriminator_forward.1} parent=1 // pred_check
      _
    $region55: #{discriminator_forward.1} parent=1 // pred_check_branch
      %61 = sbr.rel (0) target = $region57
    $region56: #{discriminator_forward.1} parent=1 // pred_region
      _
    $region57: #{discriminator_forward.1} parent=1 // pred_fallthru
      _
    // Predicated region
    $region58: #{discriminator_forward.1} parent=1 // pred_check
      _
    $region59: #{discriminator_forward.1} parent=1 // pred_check_branch
      %63 = sbr.rel (0) target = $region61
    $region60: #{discriminator_forward.1} parent=1 // pred_region
      %64 = dma.done [#allocation5], 16384
    $region61: #{discriminator_forward.1} parent=1 // pred_fallthru
      _
    %v65 = vld [vmem:[%s0] sm:$0xff]
    %v66 = vld [vmem:[%s3] sm:$0xf]
    %v67 = vld [vmem:[%s4] sm:$0x1]
    %v69 = vlaneseq
    %v70 = vshrl.u32 %v69, 7
    %v71 = vsub.s32 0, %v70
    %v72 = vrot.slane %v67, %v71
    %vm74 = vcmask 31744
    %v76 = vsel %vm74, %v65, 0
    %vm78 = vcmask 1043456
    %v80 = vsel %vm78, %v66, 0
    %82 = vmatprep.subr.mxu0 0.0
    %83 = vmatpush1.msra.mxu0 0.0
    %84 = vmatprep.subr.mxu0 0.0
    %85 = vmatpush1.msra.mxu0 0.0
    %86 = vmatprep.subr.mxu0 0.0
    %87 = vmatpush1.msra.mxu0 0.0
    %88 = vmatprep.subr.mxu0 0.0
    %89 = vmatpush1.msra.mxu0 0.0
    %90 = vmatprep.subr.mxu0 0.0
    %91 = vmatpush1.msra.mxu0 0.0
    %92 = vmatprep.subr.mxu0 0.0
    %93 = vmatpush1.msra.mxu0 0.0
    %94 = vmatprep.subr.mxu0 0.0
    %95 = vmatpush1.msra.mxu0 0.0
    %96 = vmatprep.subr.mxu0 0.0
    %97 = vmatpush1.msra.mxu0 0.0
    %98 = vmatprep.subr.mxu0 0.0
    %99 = vmatpush1.msra.mxu0 0.0
    %100 = vmatprep.subr.mxu0 0.0
    %101 = vmatpush1.msra.mxu0 0.0
    %102 = vmatprep.subr.mxu0 0.0
    %103 = vmatpush1.msra.mxu0 0.0
    %104 = vmatprep.subr.mxu0 0.0
    %105 = vmatpush1.msra.mxu0 0.0
    %106 = vmatprep.subr.mxu0 0.0
    %107 = vmatpush1.msra.mxu0 0.0
    %108 = vmatprep.subr.mxu0 0.0
    %109 = vmatpush1.msra.mxu0 0.0
    %110 = vmatprep.subr.mxu0 0.0
    %111 = vmatpush1.msra.mxu0 0.0
    %112 = vmatprep.subr.mxu0 0.0
    %113 = vmatpush1.msra.mxu0 %v80
    %114 = vmatprep.subr.mxu0 0.0
    %115 = vmatpush2.msra.mxu0 0.0
    %116 = vmatprep.subr.mxu0 0.0
    %117 = vmatpush2.msra.mxu0 0.0
    %118 = vmatprep.subr.mxu0 0.0
    %119 = vmatpush2.msra.mxu0 0.0
    %120 = vmatprep.subr.mxu0 0.0
    %121 = vmatpush2.msra.mxu0 0.0
    %122 = vmatprep.subr.mxu0 0.0
    %123 = vmatpush2.msra.mxu0 0.0
    %124 = vmatprep.subr.mxu0 0.0
    %125 = vmatpush2.msra.mxu0 0.0
    %126 = vmatprep.subr.mxu0 0.0
    %127 = vmatpush2.msra.mxu0 0.0
    %128 = vmatprep.subr.mxu0 0.0
    %129 = vmatpush2.msra.mxu0 0.0
    %130 = vmatprep.subr.mxu0 0.0
    %131 = vmatpush2.msra.mxu0 0.0
    %132 = vmatprep.subr.mxu0 0.0
    %133 = vmatpush2.msra.mxu0 0.0
    %134 = vmatprep.subr.mxu0 0.0
    %135 = vmatpush2.msra.mxu0 0.0
    %136 = vmatprep.subr.mxu0 0.0
    %137 = vmatpush2.msra.mxu0 0.0
    %138 = vmatprep.subr.mxu0 0.0
    %139 = vmatpush2.msra.mxu0 0.0
    %140 = vmatprep.subr.mxu0 0.0
    %141 = vmatpush2.msra.mxu0 0.0
    %142 = vmatprep.subr.mxu0 0.0
    %143 = vmatpush2.msra.mxu0 0.0
    %144 = vmatprep.subr.mxu0 0.0
    %145 = vmatpush2.msra.mxu0 0.0
    %146 = vmatprep.mubr.f32.mxu0 0.0
    %147 = vmatmul.mubr.f32.gmra.mxu0 %v76
    %v148 = vpop.f32.mrf.mxu0
    %v149 = vadd.f32 %v72, %v148
    %v150 = vpop.f32.mrf.mxu0
    %151 = vdwg.mxu0
    %v152 = vmul.f32 %v149, 0.2
    %v153 = vmax.f32 %v149, %v152
    %v154 = vld [vmem:[%s5] sm:$0xff]
    %v155 = vld [vmem:[%s5 + $0x8] sm:$0xff]
    %v156 = vld [vmem:[%s5 + $0x10] sm:$0xff]
    %v157 = vld [vmem:[%s5 + $0x18] sm:$0xff]
    %v158 = vld [vmem:[%s5 + $0x20] sm:$0xff]
    %v159 = vld [vmem:[%s5 + $0x28] sm:$0xff]
    %v160 = vld [vmem:[%s5 + $0x30] sm:$0xff]
    %v161 = vld [vmem:[%s5 + $0x38] sm:$0xff]
    %v162 = vld [vmem:[%s6] sm:$0x1]
    %v164 = vlaneseq
    %v165 = vshrl.u32 %v164, 7
    %v166 = vsub.s32 0, %v165
    %v167 = vrot.slane %v162, %v166
    %vm169 = vcmask 523264
    %v171 = vsel %vm169, %v153, 0
    %173 = vmatprep.subr.mxu0 0.0
    %174 = vmatpush1.msra.mxu0 0.0
    %175 = vmatprep.subr.mxu0 0.0
    %176 = vmatpush1.msra.mxu0 0.0
    %177 = vmatprep.subr.mxu0 0.0
    %178 = vmatpush1.msra.mxu0 0.0
    %179 = vmatprep.subr.mxu0 0.0
    %180 = vmatpush1.msra.mxu0 0.0
    %181 = vmatprep.subr.mxu0 0.0
    %182 = vmatpush1.msra.mxu0 0.0
    %183 = vmatprep.subr.mxu0 0.0
    %184 = vmatpush1.msra.mxu0 0.0
    %185 = vmatprep.subr.mxu0 0.0
    %186 = vmatpush1.msra.mxu0 0.0
    %187 = vmatprep.subr.mxu0 0.0
    %188 = vmatpush1.msra.mxu0 0.0
    %189 = vmatprep.subr.mxu0 0.0
    %190 = vmatpush1.msra.mxu0 %v161
    %191 = vmatprep.subr.mxu0 0.0
    %192 = vmatpush1.msra.mxu0 %v160
    %193 = vmatprep.subr.mxu0 0.0
    %194 = vmatpush1.msra.mxu0 %v159
    %195 = vmatprep.subr.mxu0 0.0
    %196 = vmatpush1.msra.mxu0 %v158
    %197 = vmatprep.subr.mxu0 0.0
    %198 = vmatpush1.msra.mxu0 %v157
    %199 = vmatprep.subr.mxu0 0.0
    %200 = vmatpush1.msra.mxu0 %v156
    %201 = vmatprep.subr.mxu0 0.0
    %202 = vmatpush1.msra.mxu0 %v155
    %203 = vmatprep.subr.mxu0 0.0
    %204 = vmatpush1.msra.mxu0 %v154
    %205 = vmatprep.subr.mxu0 0.0
    %206 = vmatpush2.msra.mxu0 0.0
    %207 = vmatprep.subr.mxu0 0.0
    %208 = vmatpush2.msra.mxu0 0.0
    %209 = vmatprep.subr.mxu0 0.0
    %210 = vmatpush2.msra.mxu0 0.0
    %211 = vmatprep.subr.mxu0 0.0
    %212 = vmatpush2.msra.mxu0 0.0
    %213 = vmatprep.subr.mxu0 0.0
    %214 = vmatpush2.msra.mxu0 0.0
    %215 = vmatprep.subr.mxu0 0.0
    %216 = vmatpush2.msra.mxu0 0.0
    %217 = vmatprep.subr.mxu0 0.0
    %218 = vmatpush2.msra.mxu0 0.0
    %219 = vmatprep.subr.mxu0 0.0
    %220 = vmatpush2.msra.mxu0 0.0
    %221 = vmatprep.subr.mxu0 0.0
    %222 = vmatpush2.msra.mxu0 0.0
    %223 = vmatprep.subr.mxu0 0.0
    %224 = vmatpush2.msra.mxu0 0.0
    %225 = vmatprep.subr.mxu0 0.0
    %226 = vmatpush2.msra.mxu0 0.0
    %227 = vmatprep.subr.mxu0 0.0
    %228 = vmatpush2.msra.mxu0 0.0
    %229 = vmatprep.subr.mxu0 0.0
    %230 = vmatpush2.msra.mxu0 0.0
    %231 = vmatprep.subr.mxu0 0.0
    %232 = vmatpush2.msra.mxu0 0.0
    %233 = vmatprep.subr.mxu0 0.0
    %234 = vmatpush2.msra.mxu0 0.0
    %235 = vmatprep.subr.mxu0 0.0
    %236 = vmatpush2.msra.mxu0 0.0
    %237 = vmatprep.mubr.f32.mxu0 0.0
    %238 = vmatmul.mubr.f32.gmra.mxu0 %v171
    %v239 = vpop.f32.mrf.mxu0
    %v240 = vadd.f32 %v167, %v239
    %v241 = vpop.f32.mrf.mxu0
    %242 = vdwg.mxu0
    %v243 = vmul.f32 %v240, 0.2
    %v244 = vmax.f32 %v240, %v243
    %v245 = vld [vmem:[%s7] sm:$0xff]
    %v246 = vld [vmem:[%s7 + $0x8] sm:$0xff]
    %v247 = vld [vmem:[%s7 + $0x10] sm:$0xff]
    %v248 = vld [vmem:[%s7 + $0x18] sm:$0xff]
    %v249 = vld [vmem:[%s7 + $0x20] sm:$0xff]
    %v250 = vld [vmem:[%s7 + $0x28] sm:$0xff]
    %v251 = vld [vmem:[%s7 + $0x30] sm:$0xff]
    %v252 = vld [vmem:[%s7 + $0x38] sm:$0xff]
    %v253 = vld [vmem:[%s7 + $0x40] sm:$0xff]
    %v254 = vld [vmem:[%s7 + $0x48] sm:$0xff]
    %v255 = vld [vmem:[%s7 + $0x50] sm:$0xff]
    %v256 = vld [vmem:[%s7 + $0x58] sm:$0xff]
    %v257 = vld [vmem:[%s7 + $0x60] sm:$0xff]
    %v258 = vld [vmem:[%s7 + $0x68] sm:$0xff]
    %v259 = vld [vmem:[%s7 + $0x70] sm:$0xff]
    %v260 = vld [vmem:[%s7 + $0x78] sm:$0xff]
    %v261 = vld [vmem:[%s7 + $0x80] sm:$0xff]
    %v262 = vld [vmem:[%s7 + $0x88] sm:$0xff]
    %v263 = vld [vmem:[%s7 + $0x90] sm:$0xff]
    %v264 = vld [vmem:[%s7 + $0x98] sm:$0xff]
    %v265 = vld [vmem:[%s7 + $0xa0] sm:$0xff]
    %v266 = vld [vmem:[%s7 + $0xa8] sm:$0xff]
    %v267 = vld [vmem:[%s7 + $0xb0] sm:$0xff]
    %v268 = vld [vmem:[%s7 + $0xb8] sm:$0xff]
    %v269 = vld [vmem:[%s7 + $0xc0] sm:$0xff]
    %v270 = vld [vmem:[%s7 + $0xc8] sm:$0xff]
    %v271 = vld [vmem:[%s7 + $0xd0] sm:$0xff]
    %v272 = vld [vmem:[%s7 + $0xd8] sm:$0xff]
    %v273 = vld [vmem:[%s7 + $0xe0] sm:$0xff]
    %v274 = vld [vmem:[%s7 + $0xe8] sm:$0xff]
    %v275 = vld [vmem:[%s7 + $0xf0] sm:$0xff]
    %v276 = vld [vmem:[%s7 + $0xf8] sm:$0xff]
    %v277 = vld [vmem:[%s8] sm:$0x3]
    %v279 = vlaneseq
    %v280 = vshrl.u32 %v279, 7
    %v281 = vsub.s32 0, %v280
    %v282 = vrot.slane %v277, %v281
    %v283 = vlaneseq
    %v284 = vshrl.u32 %v283, 7
    %v285 = vsub.s32 1, %v284
    %v286 = vrot.slane %v277, %v285
    %289 = vmatprep.subr.mxu0 %v276
    %290 = vmatpush1.msra.mxu0 %v275
    %291 = vmatprep.subr.mxu0 %v274
    %292 = vmatpush1.msra.mxu0 %v273
    %293 = vmatprep.subr.mxu0 %v272
    %294 = vmatpush1.msra.mxu0 %v271
    %295 = vmatprep.subr.mxu0 %v270
    %296 = vmatpush1.msra.mxu0 %v269
    %297 = vmatprep.subr.mxu0 %v268
    %298 = vmatpush1.msra.mxu0 %v267
    %299 = vmatprep.subr.mxu0 %v266
    %300 = vmatpush1.msra.mxu0 %v265
    %301 = vmatprep.subr.mxu0 %v264
    %302 = vmatpush1.msra.mxu0 %v263
    %303 = vmatprep.subr.mxu0 %v262
    %304 = vmatpush1.msra.mxu0 %v261
    %305 = vmatprep.subr.mxu0 %v260
    %306 = vmatpush1.msra.mxu0 %v259
    %307 = vmatprep.subr.mxu0 %v258
    %308 = vmatpush1.msra.mxu0 %v257
    %309 = vmatprep.subr.mxu0 %v256
    %310 = vmatpush1.msra.mxu0 %v255
    %311 = vmatprep.subr.mxu0 %v254
    %312 = vmatpush1.msra.mxu0 %v253
    %313 = vmatprep.subr.mxu0 %v252
    %314 = vmatpush1.msra.mxu0 %v251
    %315 = vmatprep.subr.mxu0 %v250
    %316 = vmatpush1.msra.mxu0 %v249
    %317 = vmatprep.subr.mxu0 %v248
    %318 = vmatpush1.msra.mxu0 %v247
    %319 = vmatprep.subr.mxu0 %v246
    %320 = vmatpush1.msra.mxu0 %v245
    %321 = vmatprep.subr.mxu0 0.0
    %322 = vmatpush2.msra.mxu0 0.0
    %323 = vmatprep.subr.mxu0 0.0
    %324 = vmatpush2.msra.mxu0 0.0
    %325 = vmatprep.subr.mxu0 0.0
    %326 = vmatpush2.msra.mxu0 0.0
    %327 = vmatprep.subr.mxu0 0.0
    %328 = vmatpush2.msra.mxu0 0.0
    %329 = vmatprep.subr.mxu0 0.0
    %330 = vmatpush2.msra.mxu0 0.0
    %331 = vmatprep.subr.mxu0 0.0
    %332 = vmatpush2.msra.mxu0 0.0
    %333 = vmatprep.subr.mxu0 0.0
    %334 = vmatpush2.msra.mxu0 0.0
    %335 = vmatprep.subr.mxu0 0.0
    %336 = vmatpush2.msra.mxu0 0.0
    %337 = vmatprep.subr.mxu0 0.0
    %338 = vmatpush2.msra.mxu0 0.0
    %339 = vmatprep.subr.mxu0 0.0
    %340 = vmatpush2.msra.mxu0 0.0
    %341 = vmatprep.subr.mxu0 0.0
    %342 = vmatpush2.msra.mxu0 0.0
    %343 = vmatprep.subr.mxu0 0.0
    %344 = vmatpush2.msra.mxu0 0.0
    %345 = vmatprep.subr.mxu0 0.0
    %346 = vmatpush2.msra.mxu0 0.0
    %347 = vmatprep.subr.mxu0 0.0
    %348 = vmatpush2.msra.mxu0 0.0
    %349 = vmatprep.subr.mxu0 0.0
    %350 = vmatpush2.msra.mxu0 0.0
    %351 = vmatprep.subr.mxu0 0.0
    %352 = vmatpush2.msra.mxu0 0.0
    %353 = vmatprep.mubr.f32.mxu0 0.0
    %354 = vmatmul.mubr.f32.gmra.mxu0 %v244
    %v355 = vpop.f32.mrf.mxu0
    %v356 = vadd.f32 %v282, %v355
    %v357 = vpop.f32.mrf.mxu0
    %v358 = vadd.f32 %v286, %v357
    %359 = vdwg.mxu0
    %v360 = vmul.f32 %v356, 0.2
    %v361 = vmul.f32 %v358, 0.2
    %v362 = vmax.f32 %v356, %v360
    %v363 = vmax.f32 %v358, %v361
    %v364 = vld [vmem:[#allocation4] sm:$0xff]
    %v365 = vld [vmem:[#allocation4 + $0x8] sm:$0xff]
    %v366 = vld [vmem:[#allocation4 + $0x10] sm:$0xff]
    %v367 = vld [vmem:[#allocation4 + $0x18] sm:$0xff]
    %v368 = vld [vmem:[#allocation4 + $0x20] sm:$0xff]
    %v369 = vld [vmem:[#allocation4 + $0x28] sm:$0xff]
    %v370 = vld [vmem:[#allocation4 + $0x30] sm:$0xff]
    %v371 = vld [vmem:[#allocation4 + $0x38] sm:$0xff]
    %v372 = vld [vmem:[#allocation4 + $0x40] sm:$0xff]
    %v373 = vld [vmem:[#allocation4 + $0x48] sm:$0xff]
    %v374 = vld [vmem:[#allocation4 + $0x50] sm:$0xff]
    %v375 = vld [vmem:[#allocation4 + $0x58] sm:$0xff]
    %v376 = vld [vmem:[#allocation4 + $0x60] sm:$0xff]
    %v377 = vld [vmem:[#allocation4 + $0x68] sm:$0xff]
    %v378 = vld [vmem:[#allocation4 + $0x70] sm:$0xff]
    %v379 = vld [vmem:[#allocation4 + $0x78] sm:$0xff]
    %v380 = vld [vmem:[#allocation4 + $0x80] sm:$0xff]
    %v381 = vld [vmem:[#allocation4 + $0x88] sm:$0xff]
    %v382 = vld [vmem:[#allocation4 + $0x90] sm:$0xff]
    %v383 = vld [vmem:[#allocation4 + $0x98] sm:$0xff]
    %v384 = vld [vmem:[#allocation4 + $0xa0] sm:$0xff]
    %v385 = vld [vmem:[#allocation4 + $0xa8] sm:$0xff]
    %v386 = vld [vmem:[#allocation4 + $0xb0] sm:$0xff]
    %v387 = vld [vmem:[#allocation4 + $0xb8] sm:$0xff]
    %v388 = vld [vmem:[#allocation4 + $0xc0] sm:$0xff]
    %v389 = vld [vmem:[#allocation4 + $0xc8] sm:$0xff]
    %v390 = vld [vmem:[#allocation4 + $0xd0] sm:$0xff]
    %v391 = vld [vmem:[#allocation4 + $0xd8] sm:$0xff]
    %v392 = vld [vmem:[#allocation4 + $0xe0] sm:$0xff]
    %v393 = vld [vmem:[#allocation4 + $0xe8] sm:$0xff]
    %v394 = vld [vmem:[#allocation4 + $0xf0] sm:$0xff]
    %v395 = vld [vmem:[#allocation4 + $0xf8] sm:$0xff]
    %v396 = vld [vmem:[#allocation4 + $0x100] sm:$0xff]
    %v397 = vld [vmem:[#allocation4 + $0x108] sm:$0xff]
    %v398 = vld [vmem:[#allocation4 + $0x110] sm:$0xff]
    %v399 = vld [vmem:[#allocation4 + $0x118] sm:$0xff]
    %v400 = vld [vmem:[#allocation4 + $0x120] sm:$0xff]
    %v401 = vld [vmem:[#allocation4 + $0x128] sm:$0xff]
    %v402 = vld [vmem:[#allocation4 + $0x130] sm:$0xff]
    %v403 = vld [vmem:[#allocation4 + $0x138] sm:$0xff]
    %v404 = vld [vmem:[#allocation4 + $0x140] sm:$0xff]
    %v405 = vld [vmem:[#allocation4 + $0x148] sm:$0xff]
    %v406 = vld [vmem:[#allocation4 + $0x150] sm:$0xff]
    %v407 = vld [vmem:[#allocation4 + $0x158] sm:$0xff]
    %v408 = vld [vmem:[#allocation4 + $0x160] sm:$0xff]
    %v409 = vld [vmem:[#allocation4 + $0x168] sm:$0xff]
    %v410 = vld [vmem:[#allocation4 + $0x170] sm:$0xff]
    %v411 = vld [vmem:[#allocation4 + $0x178] sm:$0xff]
    %v412 = vld [vmem:[#allocation4 + $0x180] sm:$0xff]
    %v413 = vld [vmem:[#allocation4 + $0x188] sm:$0xff]
    %v414 = vld [vmem:[#allocation4 + $0x190] sm:$0xff]
    %v415 = vld [vmem:[#allocation4 + $0x198] sm:$0xff]
    %v416 = vld [vmem:[#allocation4 + $0x1a0] sm:$0xff]
    %v417 = vld [vmem:[#allocation4 + $0x1a8] sm:$0xff]
    %v418 = vld [vmem:[#allocation4 + $0x1b0] sm:$0xff]
    %v419 = vld [vmem:[#allocation4 + $0x1b8] sm:$0xff]
    %v420 = vld [vmem:[#allocation4 + $0x1c0] sm:$0xff]
    %v421 = vld [vmem:[#allocation4 + $0x1c8] sm:$0xff]
    %v422 = vld [vmem:[#allocation4 + $0x1d0] sm:$0xff]
    %v423 = vld [vmem:[#allocation4 + $0x1d8] sm:$0xff]
    %v424 = vld [vmem:[#allocation4 + $0x1e0] sm:$0xff]
    %v425 = vld [vmem:[#allocation4 + $0x1e8] sm:$0xff]
    %v426 = vld [vmem:[#allocation4 + $0x1f0] sm:$0xff]
    %v427 = vld [vmem:[#allocation4 + $0x1f8] sm:$0xff]
    %v428 = vld [vmem:[#allocation4 + $0x200] sm:$0xff]
    %v429 = vld [vmem:[#allocation4 + $0x208] sm:$0xff]
    %v430 = vld [vmem:[#allocation4 + $0x210] sm:$0xff]
    %v431 = vld [vmem:[#allocation4 + $0x218] sm:$0xff]
    %v432 = vld [vmem:[#allocation4 + $0x220] sm:$0xff]
    %v433 = vld [vmem:[#allocation4 + $0x228] sm:$0xff]
    %v434 = vld [vmem:[#allocation4 + $0x230] sm:$0xff]
    %v435 = vld [vmem:[#allocation4 + $0x238] sm:$0xff]
    %v436 = vld [vmem:[#allocation4 + $0x240] sm:$0xff]
    %v437 = vld [vmem:[#allocation4 + $0x248] sm:$0xff]
    %v438 = vld [vmem:[#allocation4 + $0x250] sm:$0xff]
    %v439 = vld [vmem:[#allocation4 + $0x258] sm:$0xff]
    %v440 = vld [vmem:[#allocation4 + $0x260] sm:$0xff]
    %v441 = vld [vmem:[#allocation4 + $0x268] sm:$0xff]
    %v442 = vld [vmem:[#allocation4 + $0x270] sm:$0xff]
    %v443 = vld [vmem:[#allocation4 + $0x278] sm:$0xff]
    %v444 = vld [vmem:[#allocation4 + $0x280] sm:$0xff]
    %v445 = vld [vmem:[#allocation4 + $0x288] sm:$0xff]
    %v446 = vld [vmem:[#allocation4 + $0x290] sm:$0xff]
    %v447 = vld [vmem:[#allocation4 + $0x298] sm:$0xff]
    %v448 = vld [vmem:[#allocation4 + $0x2a0] sm:$0xff]
    %v449 = vld [vmem:[#allocation4 + $0x2a8] sm:$0xff]
    %v450 = vld [vmem:[#allocation4 + $0x2b0] sm:$0xff]
    %v451 = vld [vmem:[#allocation4 + $0x2b8] sm:$0xff]
    %v452 = vld [vmem:[#allocation4 + $0x2c0] sm:$0xff]
    %v453 = vld [vmem:[#allocation4 + $0x2c8] sm:$0xff]
    %v454 = vld [vmem:[#allocation4 + $0x2d0] sm:$0xff]
    %v455 = vld [vmem:[#allocation4 + $0x2d8] sm:$0xff]
    %v456 = vld [vmem:[#allocation4 + $0x2e0] sm:$0xff]
    %v457 = vld [vmem:[#allocation4 + $0x2e8] sm:$0xff]
    %v458 = vld [vmem:[#allocation4 + $0x2f0] sm:$0xff]
    %v459 = vld [vmem:[#allocation4 + $0x2f8] sm:$0xff]
    %v460 = vld [vmem:[#allocation4 + $0x300] sm:$0xff]
    %v461 = vld [vmem:[#allocation4 + $0x308] sm:$0xff]
    %v462 = vld [vmem:[#allocation4 + $0x310] sm:$0xff]
    %v463 = vld [vmem:[#allocation4 + $0x318] sm:$0xff]
    %v464 = vld [vmem:[#allocation4 + $0x320] sm:$0xff]
    %v465 = vld [vmem:[#allocation4 + $0x328] sm:$0xff]
    %v466 = vld [vmem:[#allocation4 + $0x330] sm:$0xff]
    %v467 = vld [vmem:[#allocation4 + $0x338] sm:$0xff]
    %v468 = vld [vmem:[#allocation4 + $0x340] sm:$0xff]
    %v469 = vld [vmem:[#allocation4 + $0x348] sm:$0xff]
    %v470 = vld [vmem:[#allocation4 + $0x350] sm:$0xff]
    %v471 = vld [vmem:[#allocation4 + $0x358] sm:$0xff]
    %v472 = vld [vmem:[#allocation4 + $0x360] sm:$0xff]
    %v473 = vld [vmem:[#allocation4 + $0x368] sm:$0xff]
    %v474 = vld [vmem:[#allocation4 + $0x370] sm:$0xff]
    %v475 = vld [vmem:[#allocation4 + $0x378] sm:$0xff]
    %v476 = vld [vmem:[#allocation4 + $0x380] sm:$0xff]
    %v477 = vld [vmem:[#allocation4 + $0x388] sm:$0xff]
    %v478 = vld [vmem:[#allocation4 + $0x390] sm:$0xff]
    %v479 = vld [vmem:[#allocation4 + $0x398] sm:$0xff]
    %v480 = vld [vmem:[#allocation4 + $0x3a0] sm:$0xff]
    %v481 = vld [vmem:[#allocation4 + $0x3a8] sm:$0xff]
    %v482 = vld [vmem:[#allocation4 + $0x3b0] sm:$0xff]
    %v483 = vld [vmem:[#allocation4 + $0x3b8] sm:$0xff]
    %v484 = vld [vmem:[#allocation4 + $0x3c0] sm:$0xff]
    %v485 = vld [vmem:[#allocation4 + $0x3c8] sm:$0xff]
    %v486 = vld [vmem:[#allocation4 + $0x3d0] sm:$0xff]
    %v487 = vld [vmem:[#allocation4 + $0x3d8] sm:$0xff]
    %v488 = vld [vmem:[#allocation4 + $0x3e0] sm:$0xff]
    %v489 = vld [vmem:[#allocation4 + $0x3e8] sm:$0xff]
    %v490 = vld [vmem:[#allocation4 + $0x3f0] sm:$0xff]
    %v491 = vld [vmem:[#allocation4 + $0x3f8] sm:$0xff]
    %v492 = vld [vmem:[%s10] sm:$0xf]
    %v494 = vlaneseq
    %v495 = vshrl.u32 %v494, 7
    %v496 = vsub.s32 0, %v495
    %v497 = vrot.slane %v492, %v496
    %v498 = vlaneseq
    %v499 = vshrl.u32 %v498, 7
    %v500 = vsub.s32 1, %v499
    %v501 = vrot.slane %v492, %v500
    %v502 = vlaneseq
    %v503 = vshrl.u32 %v502, 7
    %v504 = vsub.s32 2, %v503
    %v505 = vrot.slane %v492, %v504
    %v506 = vlaneseq
    %v507 = vshrl.u32 %v506, 7
    %v508 = vsub.s32 3, %v507
    %v509 = vrot.slane %v492, %v508
    %514 = vmatprep.subr.mxu0 %v425
    %515 = vmatpush1.msra.mxu0 %v424
    %516 = vmatprep.subr.mxu0 %v421
    %517 = vmatpush1.msra.mxu0 %v420
    %518 = vmatprep.subr.mxu0 %v417
    %519 = vmatpush1.msra.mxu0 %v416
    %520 = vmatprep.subr.mxu0 %v413
    %521 = vmatpush1.msra.mxu0 %v412
    %522 = vmatprep.subr.mxu0 %v409
    %523 = vmatpush1.msra.mxu0 %v408
    %524 = vmatprep.subr.mxu0 %v405
    %525 = vmatpush1.msra.mxu0 %v404
    %526 = vmatprep.subr.mxu0 %v401
    %527 = vmatpush1.msra.mxu0 %v400
    %528 = vmatprep.subr.mxu0 %v397
    %529 = vmatpush1.msra.mxu0 %v396
    %530 = vmatprep.subr.mxu0 %v393
    %531 = vmatpush1.msra.mxu0 %v392
    %532 = vmatprep.subr.mxu0 %v389
    %533 = vmatpush1.msra.mxu0 %v388
    %534 = vmatprep.subr.mxu0 %v385
    %535 = vmatpush1.msra.mxu0 %v384
    %536 = vmatprep.subr.mxu0 %v381
    %537 = vmatpush1.msra.mxu0 %v380
    %538 = vmatprep.subr.mxu0 %v377
    %539 = vmatpush1.msra.mxu0 %v376
    %540 = vmatprep.subr.mxu0 %v373
    %541 = vmatpush1.msra.mxu0 %v372
    %542 = vmatprep.subr.mxu0 %v369
    %543 = vmatpush1.msra.mxu0 %v368
    %544 = vmatprep.subr.mxu0 %v365
    %545 = vmatpush1.msra.mxu0 %v364
    %546 = vmatprep.subr.mxu0 %v489
    %547 = vmatpush2.msra.mxu0 %v488
    %548 = vmatprep.subr.mxu0 %v485
    %549 = vmatpush2.msra.mxu0 %v484
    %550 = vmatprep.subr.mxu0 %v481
    %551 = vmatpush2.msra.mxu0 %v480
    %552 = vmatprep.subr.mxu0 %v477
    %553 = vmatpush2.msra.mxu0 %v476
    %554 = vmatprep.subr.mxu0 %v473
    %555 = vmatpush2.msra.mxu0 %v472
    %556 = vmatprep.subr.mxu0 %v469
    %557 = vmatpush2.msra.mxu0 %v468
    %558 = vmatprep.subr.mxu0 %v465
    %559 = vmatpush2.msra.mxu0 %v464
    %560 = vmatprep.subr.mxu0 %v461
    %561 = vmatpush2.msra.mxu0 %v460
    %562 = vmatprep.subr.mxu0 %v457
    %563 = vmatpush2.msra.mxu0 %v456
    %564 = vmatprep.subr.mxu0 %v453
    %565 = vmatpush2.msra.mxu0 %v452
    %566 = vmatprep.subr.mxu0 %v449
    %567 = vmatpush2.msra.mxu0 %v448
    %568 = vmatprep.subr.mxu0 %v445
    %569 = vmatpush2.msra.mxu0 %v444
    %570 = vmatprep.subr.mxu0 %v441
    %571 = vmatpush2.msra.mxu0 %v440
    %572 = vmatprep.subr.mxu0 %v437
    %573 = vmatpush2.msra.mxu0 %v436
    %574 = vmatprep.subr.mxu0 %v433
    %575 = vmatpush2.msra.mxu0 %v432
    %576 = vmatprep.subr.mxu0 %v429
    %577 = vmatpush2.msra.mxu0 %v428
    %578 = vmatprep.mubr.f32.mxu0 %v363
    %579 = vmatmul.mubr.f32.gmra.mxu0 %v362
    %v580 = vpop.f32.mrf.mxu0
    %v581 = vadd.f32 %v497, %v580
    %v582 = vpop.f32.mrf.mxu0
    %v583 = vadd.f32 %v501, %v582
    %584 = vdwg.mxu0
    %585 = vmatprep.subr.mxu0 %v427
    %586 = vmatpush1.msra.mxu0 %v426
    %587 = vmatprep.subr.mxu0 %v423
    %588 = vmatpush1.msra.mxu0 %v422
    %589 = vmatprep.subr.mxu0 %v419
    %590 = vmatpush1.msra.mxu0 %v418
    %591 = vmatprep.subr.mxu0 %v415
    %592 = vmatpush1.msra.mxu0 %v414
    %593 = vmatprep.subr.mxu0 %v411
    %594 = vmatpush1.msra.mxu0 %v410
    %595 = vmatprep.subr.mxu0 %v407
    %596 = vmatpush1.msra.mxu0 %v406
    %597 = vmatprep.subr.mxu0 %v403
    %598 = vmatpush1.msra.mxu0 %v402
    %599 = vmatprep.subr.mxu0 %v399
    %600 = vmatpush1.msra.mxu0 %v398
    %601 = vmatprep.subr.mxu0 %v395
    %602 = vmatpush1.msra.mxu0 %v394
    %603 = vmatprep.subr.mxu0 %v391
    %604 = vmatpush1.msra.mxu0 %v390
    %605 = vmatprep.subr.mxu0 %v387
    %606 = vmatpush1.msra.mxu0 %v386
    %607 = vmatprep.subr.mxu0 %v383
    %608 = vmatpush1.msra.mxu0 %v382
    %609 = vmatprep.subr.mxu0 %v379
    %610 = vmatpush1.msra.mxu0 %v378
    %611 = vmatprep.subr.mxu0 %v375
    %612 = vmatpush1.msra.mxu0 %v374
    %613 = vmatprep.subr.mxu0 %v371
    %614 = vmatpush1.msra.mxu0 %v370
    %615 = vmatprep.subr.mxu0 %v367
    %616 = vmatpush1.msra.mxu0 %v366
    %617 = vmatprep.subr.mxu0 %v491
    %618 = vmatpush2.msra.mxu0 %v490
    %619 = vmatprep.subr.mxu0 %v487
    %620 = vmatpush2.msra.mxu0 %v486
    %621 = vmatprep.subr.mxu0 %v483
    %622 = vmatpush2.msra.mxu0 %v482
    %623 = vmatprep.subr.mxu0 %v479
    %624 = vmatpush2.msra.mxu0 %v478
    %625 = vmatprep.subr.mxu0 %v475
    %626 = vmatpush2.msra.mxu0 %v474
    %627 = vmatprep.subr.mxu0 %v471
    %628 = vmatpush2.msra.mxu0 %v470
    %629 = vmatprep.subr.mxu0 %v467
    %630 = vmatpush2.msra.mxu0 %v466
    %631 = vmatprep.subr.mxu0 %v463
    %632 = vmatpush2.msra.mxu0 %v462
    %633 = vmatprep.subr.mxu0 %v459
    %634 = vmatpush2.msra.mxu0 %v458
    %635 = vmatprep.subr.mxu0 %v455
    %636 = vmatpush2.msra.mxu0 %v454
    %637 = vmatprep.subr.mxu0 %v451
    %638 = vmatpush2.msra.mxu0 %v450
    %639 = vmatprep.subr.mxu0 %v447
    %640 = vmatpush2.msra.mxu0 %v446
    %641 = vmatprep.subr.mxu0 %v443
    %642 = vmatpush2.msra.mxu0 %v442
    %643 = vmatprep.subr.mxu0 %v439
    %644 = vmatpush2.msra.mxu0 %v438
    %645 = vmatprep.subr.mxu0 %v435
    %646 = vmatpush2.msra.mxu0 %v434
    %647 = vmatprep.subr.mxu0 %v431
    %648 = vmatpush2.msra.mxu0 %v430
    %649 = vmatprep.mubr.f32.mxu0 %v363
    %650 = vmatmul.mubr.f32.gmra.mxu0 %v362
    %v651 = vpop.f32.mrf.mxu0
    %v652 = vadd.f32 %v505, %v651
    %v653 = vpop.f32.mrf.mxu0
    %v654 = vadd.f32 %v509, %v653
    %655 = vdwg.mxu0
    %v656 = vmul.f32 %v581, 0.2
    %v657 = vmul.f32 %v583, 0.2
    %v658 = vmul.f32 %v652, 0.2
    %v659 = vmul.f32 %v654, 0.2
    %v660 = vmax.f32 %v581, %v656
    %v661 = vmax.f32 %v583, %v657
    %v662 = vmax.f32 %v652, %v658
    %v663 = vmax.f32 %v654, %v659
    %v664 = vld [vmem:[%s1] sm:$0xff]
    %v665 = vld [vmem:[%s2] sm:$0xff]
    %v666 = vsub.f32 %v664, %v665
    %v667 = vand.u32 2147483647, %v666
    %v668 = vand.u32 2147483647, %v664
    %v669 = vrcp.pop %v668
    %v670 = vmul.f32 %v667, %v669
    %v671 = vld [vmem:[%s11] sm:$0xff]
    %v672 = vld [vmem:[%s11 + $0x8] sm:$0xff]
    %v673 = vld [vmem:[%s11 + $0x10] sm:$0xff]
    %v674 = vld [vmem:[%s11 + $0x18] sm:$0xff]
    %v675 = vld [vmem:[%s11 + $0x20] sm:$0xff]
    %v676 = vld [vmem:[%s11 + $0x28] sm:$0xff]
    %v677 = vld [vmem:[%s11 + $0x30] sm:$0xff]
    %v678 = vld [vmem:[%s11 + $0x38] sm:$0xff]
    %v679 = vld [vmem:[%s11 + $0x40] sm:$0xff]
    %v680 = vld [vmem:[%s11 + $0x48] sm:$0xff]
    %v681 = vld [vmem:[%s11 + $0x50] sm:$0xff]
    %v682 = vld [vmem:[%s11 + $0x58] sm:$0xff]
    %v683 = vld [vmem:[%s11 + $0x60] sm:$0xff]
    %v684 = vld [vmem:[%s11 + $0x68] sm:$0xff]
    %v685 = vld [vmem:[%s11 + $0x70] sm:$0xff]
    %v686 = vld [vmem:[%s11 + $0x78] sm:$0xff]
    %v687 = vld [vmem:[%s11 + $0x80] sm:$0xff]
    %v688 = vld [vmem:[%s11 + $0x88] sm:$0xff]
    %v689 = vld [vmem:[%s11 + $0x90] sm:$0xff]
    %v690 = vld [vmem:[%s11 + $0x98] sm:$0xff]
    %v691 = vld [vmem:[%s11 + $0xa0] sm:$0xff]
    %v692 = vld [vmem:[%s11 + $0xa8] sm:$0xff]
    %v693 = vld [vmem:[%s11 + $0xb0] sm:$0xff]
    %v694 = vld [vmem:[%s11 + $0xb8] sm:$0xff]
    %v695 = vld [vmem:[%s11 + $0xc0] sm:$0xff]
    %v696 = vld [vmem:[%s11 + $0xc8] sm:$0xff]
    %v697 = vld [vmem:[%s11 + $0xd0] sm:$0xff]
    %v698 = vld [vmem:[%s11 + $0xd8] sm:$0xff]
    %v699 = vld [vmem:[%s11 + $0xe0] sm:$0xff]
    %v700 = vld [vmem:[%s11 + $0xe8] sm:$0xff]
    %v701 = vld [vmem:[%s11 + $0xf0] sm:$0xff]
    %v702 = vld [vmem:[%s11 + $0xf8] sm:$0xff]
    %v703 = vld [vmem:[%s11 + $0x100] sm:$0xff]
    %v704 = vld [vmem:[%s11 + $0x108] sm:$0xff]
    %v705 = vld [vmem:[%s11 + $0x110] sm:$0xff]
    %v706 = vld [vmem:[%s11 + $0x118] sm:$0xff]
    %v707 = vld [vmem:[%s11 + $0x120] sm:$0xff]
    %v708 = vld [vmem:[%s11 + $0x128] sm:$0xff]
    %v709 = vld [vmem:[%s11 + $0x130] sm:$0xff]
    %v710 = vld [vmem:[%s11 + $0x138] sm:$0xff]
    %v711 = vld [vmem:[%s11 + $0x140] sm:$0xff]
    %v712 = vld [vmem:[%s11 + $0x148] sm:$0xff]
    %v713 = vld [vmem:[%s11 + $0x150] sm:$0xff]
    %v714 = vld [vmem:[%s11 + $0x158] sm:$0xff]
    %v715 = vld [vmem:[%s11 + $0x160] sm:$0xff]
    %v716 = vld [vmem:[%s11 + $0x168] sm:$0xff]
    %v717 = vld [vmem:[%s11 + $0x170] sm:$0xff]
    %v718 = vld [vmem:[%s11 + $0x178] sm:$0xff]
    %v719 = vld [vmem:[%s11 + $0x180] sm:$0xff]
    %v720 = vld [vmem:[%s11 + $0x188] sm:$0xff]
    %v721 = vld [vmem:[%s11 + $0x190] sm:$0xff]
    %v722 = vld [vmem:[%s11 + $0x198] sm:$0xff]
    %v723 = vld [vmem:[%s11 + $0x1a0] sm:$0xff]
    %v724 = vld [vmem:[%s11 + $0x1a8] sm:$0xff]
    %v725 = vld [vmem:[%s11 + $0x1b0] sm:$0xff]
    %v726 = vld [vmem:[%s11 + $0x1b8] sm:$0xff]
    %v727 = vld [vmem:[%s11 + $0x1c0] sm:$0xff]
    %v728 = vld [vmem:[%s11 + $0x1c8] sm:$0xff]
    %v729 = vld [vmem:[%s11 + $0x1d0] sm:$0xff]
    %v730 = vld [vmem:[%s11 + $0x1d8] sm:$0xff]
    %v731 = vld [vmem:[%s11 + $0x1e0] sm:$0xff]
    %v732 = vld [vmem:[%s11 + $0x1e8] sm:$0xff]
    %v733 = vld [vmem:[%s11 + $0x1f0] sm:$0xff]
    %v734 = vld [vmem:[%s11 + $0x1f8] sm:$0xff]
    %v735 = vld [vmem:[#allocation2] sm:$0x1]
    %v737 = vlaneseq
    %v738 = vshrl.u32 %v737, 7
    %v739 = vsub.s32 0, %v738
    %v740 = vrot.slane %v735, %v739
    %v742 = vmul.f32 %v670, %v740
    %743 = vmatprep.subr.mxu0 0.0
    %744 = vmatpush1.msra.mxu0 %v686
    %745 = vmatprep.subr.mxu0 0.0
    %746 = vmatpush1.msra.mxu0 %v685
    %747 = vmatprep.subr.mxu0 0.0
    %748 = vmatpush1.msra.mxu0 %v684
    %749 = vmatprep.subr.mxu0 0.0
    %750 = vmatpush1.msra.mxu0 %v683
    %751 = vmatprep.subr.mxu0 0.0
    %752 = vmatpush1.msra.mxu0 %v682
    %753 = vmatprep.subr.mxu0 0.0
    %754 = vmatpush1.msra.mxu0 %v681
    %755 = vmatprep.subr.mxu0 0.0
    %756 = vmatpush1.msra.mxu0 %v680
    %757 = vmatprep.subr.mxu0 0.0
    %758 = vmatpush1.msra.mxu0 %v679
    %759 = vmatprep.subr.mxu0 0.0
    %760 = vmatpush1.msra.mxu0 %v678
    %761 = vmatprep.subr.mxu0 0.0
    %762 = vmatpush1.msra.mxu0 %v677
    %763 = vmatprep.subr.mxu0 0.0
    %764 = vmatpush1.msra.mxu0 %v676
    %765 = vmatprep.subr.mxu0 0.0
    %766 = vmatpush1.msra.mxu0 %v675
    %767 = vmatprep.subr.mxu0 0.0
    %768 = vmatpush1.msra.mxu0 %v674
    %769 = vmatprep.subr.mxu0 0.0
    %770 = vmatpush1.msra.mxu0 %v673
    %771 = vmatprep.subr.mxu0 0.0
    %772 = vmatpush1.msra.mxu0 %v672
    %773 = vmatprep.subr.mxu0 0.0
    %774 = vmatpush1.msra.mxu0 %v671
    %775 = vmatprep.subr.mxu0 0.0
    %776 = vmatpush2.msra.mxu0 %v702
    %777 = vmatprep.subr.mxu0 0.0
    %778 = vmatpush2.msra.mxu0 %v701
    %779 = vmatprep.subr.mxu0 0.0
    %780 = vmatpush2.msra.mxu0 %v700
    %781 = vmatprep.subr.mxu0 0.0
    %782 = vmatpush2.msra.mxu0 %v699
    %783 = vmatprep.subr.mxu0 0.0
    %784 = vmatpush2.msra.mxu0 %v698
    %785 = vmatprep.subr.mxu0 0.0
    %786 = vmatpush2.msra.mxu0 %v697
    %787 = vmatprep.subr.mxu0 0.0
    %788 = vmatpush2.msra.mxu0 %v696
    %789 = vmatprep.subr.mxu0 0.0
    %790 = vmatpush2.msra.mxu0 %v695
    %791 = vmatprep.subr.mxu0 0.0
    %792 = vmatpush2.msra.mxu0 %v694
    %793 = vmatprep.subr.mxu0 0.0
    %794 = vmatpush2.msra.mxu0 %v693
    %795 = vmatprep.subr.mxu0 0.0
    %796 = vmatpush2.msra.mxu0 %v692
    %797 = vmatprep.subr.mxu0 0.0
    %798 = vmatpush2.msra.mxu0 %v691
    %799 = vmatprep.subr.mxu0 0.0
    %800 = vmatpush2.msra.mxu0 %v690
    %801 = vmatprep.subr.mxu0 0.0
    %802 = vmatpush2.msra.mxu0 %v689
    %803 = vmatprep.subr.mxu0 0.0
    %804 = vmatpush2.msra.mxu0 %v688
    %805 = vmatprep.subr.mxu0 0.0
    %806 = vmatpush2.msra.mxu0 %v687
    %807 = vmatprep.mubr.f32.mxu0 %v661
    %808 = vmatmul.mubr.f32.gmra.mxu0 %v660
    %v809 = vpop.f32.mrf.mxu0
    %v810 = vadd.f32 %v742, %v809
    %v811 = vpop.f32.mrf.mxu0
    %812 = vdwg.mxu0
    %813 = vmatprep.subr.mxu0 0.0
    %814 = vmatpush1.msra.mxu0 %v718
    %815 = vmatprep.subr.mxu0 0.0
    %816 = vmatpush1.msra.mxu0 %v717
    %817 = vmatprep.subr.mxu0 0.0
    %818 = vmatpush1.msra.mxu0 %v716
    %819 = vmatprep.subr.mxu0 0.0
    %820 = vmatpush1.msra.mxu0 %v715
    %821 = vmatprep.subr.mxu0 0.0
    %822 = vmatpush1.msra.mxu0 %v714
    %823 = vmatprep.subr.mxu0 0.0
    %824 = vmatpush1.msra.mxu0 %v713
    %825 = vmatprep.subr.mxu0 0.0
    %826 = vmatpush1.msra.mxu0 %v712
    %827 = vmatprep.subr.mxu0 0.0
    %828 = vmatpush1.msra.mxu0 %v711
    %829 = vmatprep.subr.mxu0 0.0
    %830 = vmatpush1.msra.mxu0 %v710
    %831 = vmatprep.subr.mxu0 0.0
    %832 = vmatpush1.msra.mxu0 %v709
    %833 = vmatprep.subr.mxu0 0.0
    %834 = vmatpush1.msra.mxu0 %v708
    %835 = vmatprep.subr.mxu0 0.0
    %836 = vmatpush1.msra.mxu0 %v707
    %837 = vmatprep.subr.mxu0 0.0
    %838 = vmatpush1.msra.mxu0 %v706
    %839 = vmatprep.subr.mxu0 0.0
    %840 = vmatpush1.msra.mxu0 %v705
    %841 = vmatprep.subr.mxu0 0.0
    %842 = vmatpush1.msra.mxu0 %v704
    %843 = vmatprep.subr.mxu0 0.0
    %844 = vmatpush1.msra.mxu0 %v703
    %845 = vmatprep.subr.mxu0 0.0
    %846 = vmatpush2.msra.mxu0 %v734
    %847 = vmatprep.subr.mxu0 0.0
    %848 = vmatpush2.msra.mxu0 %v733
    %849 = vmatprep.subr.mxu0 0.0
    %850 = vmatpush2.msra.mxu0 %v732
    %851 = vmatprep.subr.mxu0 0.0
    %852 = vmatpush2.msra.mxu0 %v731
    %853 = vmatprep.subr.mxu0 0.0
    %854 = vmatpush2.msra.mxu0 %v730
    %855 = vmatprep.subr.mxu0 0.0
    %856 = vmatpush2.msra.mxu0 %v729
    %857 = vmatprep.subr.mxu0 0.0
    %858 = vmatpush2.msra.mxu0 %v728
    %859 = vmatprep.subr.mxu0 0.0
    %860 = vmatpush2.msra.mxu0 %v727
    %861 = vmatprep.subr.mxu0 0.0
    %862 = vmatpush2.msra.mxu0 %v726
    %863 = vmatprep.subr.mxu0 0.0
    %864 = vmatpush2.msra.mxu0 %v725
    %865 = vmatprep.subr.mxu0 0.0
    %866 = vmatpush2.msra.mxu0 %v724
    %867 = vmatprep.subr.mxu0 0.0
    %868 = vmatpush2.msra.mxu0 %v723
    %869 = vmatprep.subr.mxu0 0.0
    %870 = vmatpush2.msra.mxu0 %v722
    %871 = vmatprep.subr.mxu0 0.0
    %872 = vmatpush2.msra.mxu0 %v721
    %873 = vmatprep.subr.mxu0 0.0
    %874 = vmatpush2.msra.mxu0 %v720
    %875 = vmatprep.subr.mxu0 0.0
    %876 = vmatpush2.msra.mxu0 %v719
    %877 = vmatprep.mubr.f32.mxu0 %v663
    %878 = vmatmul.mubr.f32.gmra.mxu0 %v662
    %v879 = vpop.f32.mrf.mxu0
    %v880 = vadd.f32 %v810, %v879
    %v881 = vpop.f32.mrf.mxu0
    %882 = vdwg.mxu0
    %v883 = vld [vmem:[#allocation3] sm:$0x1]
    %v885 = vlaneseq
    %v886 = vshrl.u32 %v885, 7
    %v887 = vsub.s32 0, %v886
    %v888 = vrot.slane %v883, %v887
    %v890 = vadd.f32 %v880, %v888
    %v891 = vsub.f32 0.0, %v890
    %v892 = vmul.f32 %v891, 1.442695
    %v893 = vpow.pop %v892
    %v894 = vadd.f32 %v893, 1.0
    %v895 = vrcp.pop %v894
    %vm896 = vcmask 7168
    %897 = vst.msk [vmem:[%s14] sm:$0xff] %vm896, %v895
    // Predicated region
    $region62: #{discriminator_forward.1} parent=1 // pred_check
      _
    $region63: #{discriminator_forward.1} parent=1 // pred_check_branch
      %899 = sbr.rel (0) target = $region65
    $region64: #{discriminator_forward.1} parent=1 // pred_region
      _
    $region65: #{discriminator_forward.1} parent=1 // pred_fallthru
      _
    // Predicated region
    $region66: #{discriminator_forward.1} parent=1 // pred_check
      _
    $region67: #{discriminator_forward.1} parent=1 // pred_check_branch
      %901 = sbr.rel (0) target = $region69
    $region68: #{discriminator_forward.1} parent=1 // pred_region
      _
    $region69: #{discriminator_forward.1} parent=1 // pred_fallthru
      _
    %902 = vsyncpa [#allocation5], 1

</llo_original>
